<compile_context>
chip_gen: v5e
topology: v5e:2x2
jax: 0.10.0
libtpu: 0.0.40
codegen_flags: <defaults>
</compile_context>

<pallas_src>
import jax
import jax.numpy as jnp
from jax.experimental import pallas as pl
from jax.experimental.pallas import tpu as pltpu


def _softplus(x):
    # Matches torch.nn.functional.softplus(beta=1, threshold=20).
    return jnp.where(x > 20.0, x, jnp.log1p(jnp.exp(jnp.minimum(x, 20.0))))


def encoder_mlp_kernel(x_ref, w1_ref, b1_ref, w2_ref, b2_ref, w3_ref, b3_ref,
                       z_ref):
    # Layer 1: Linear(dim_x -> dim_h1) + ReLU.  MXU runs in the weight dtype;
    # accumulation is f32.  Cast x only if its dtype differs from the weights
    # (bf16 producers skip the VPU cast entirely).
    x = x_ref[...]
    if x.dtype != w1_ref.dtype:
        x = x.astype(w1_ref.dtype)
    h = jnp.dot(x, w1_ref[...], preferred_element_type=jnp.float32)
    h = jnp.maximum(h + b1_ref[...], 0.0)

    # Layer 2: Linear(dim_h1 -> dim_h2) + ReLU.
    h = jnp.dot(h.astype(w2_ref.dtype), w2_ref[...],
                preferred_element_type=jnp.float32)
    h = jnp.maximum(h + b2_ref[...], 0.0)

    # Layer 3: single (dim_h2, 2*dim_z) dot -> one lane-dense (bt, 2*dim_z)
    # output block.  Softplus only on the std half via a lane mask; mu/std are
    # split in the wrapper.
    z = jnp.dot(h.astype(w3_ref.dtype), w3_ref[...],
                preferred_element_type=jnp.float32) + b3_ref[...]
    two_dim_z = z_ref.shape[-1]
    lane = jax.lax.broadcasted_iota(jnp.int32, z.shape, 1)
    z = jnp.where(lane >= (two_dim_z // 2), _softplus(z), z)
    z_ref[...] = z.astype(z_ref.dtype)


def _pick_batch_tile(B, dim_x, x_itemsize):
    """Largest-tile heuristic (kernel is HBM-bound on the x stream).

    Budget ~8 MiB for the double-buffered x tile -> 512-1024 f32 rows, which
    measures ~85% of HBM roofline, and stays inside every generation's default
    scoped-VMEM limit (v5e 16 MiB, v6e/v7x 32 MiB; v7x physical is 64 MiB).
    Small batches run as a single grid step (sequential grid on v5e/v6e).
    """
    budget = 8 * 1024 * 1024
    cap = (budget // (2 * dim_x * x_itemsize)) // 8 * 8
    cap = max(8, min(1024, cap))
    if B <= cap:
        return B
    # Largest multiple-of-8 divisor <= cap (keeps every tile full).
    for cand in range(cap, 7, -8):
        if B % cand == 0:
            return cand
    # No clean divisor: keep the big tile and let Pallas mask the ragged last
    # block (grid uses pl.cdiv) rather than falling back to one giant step.
    return cap


def _vmem_estimate(bt, dim_x, dim_h1, dim_h2, dim_z, x_bytes, w_bytes, o_bytes):
    x_buf = 2 * bt * dim_x * x_bytes                       # x double buffer
    w_buf = 2 * (dim_x * dim_h1 + dim_h1 * dim_h2 + dim_h2 * 2 * dim_z) * w_bytes
    b_buf = 2 * (dim_h1 + dim_h2 + 2 * dim_z) * 4
    o_buf = 2 * bt * (2 * dim_z) * o_bytes                 # output double buffer
    act = 2 * bt * max(dim_h1, dim_h2) * 4                 # f32 intermediates
    return x_buf + w_buf + b_buf + o_buf + act


def encoder_mlp(x, params, *, batch_tile=None, weights_dtype=None,
                out_dtype=None):
    """Encoder_MLP forward: x (B, C, H, W) -> (z_mu, z_std), each (B, dim_z)."""
    w1, b1 = params["w1"], params["b1"]
    w2, b2 = params["w2"], params["b2"]
    w3, b3 = params["w3"], params["b3"]

    B = x.shape[0]
    dim_x = w1.shape[0]
    dim_h1 = w1.shape[1]
    dim_h2 = w2.shape[1]
    dim_z = w3.shape[1] // 2

    x2d = x.reshape(B, -1)                     # NCHW flatten, same as torch .view
    assert x2d.shape[1] == dim_x

    # Robust to PyTorch-converted params: biases may be (out,) or (1, out).
    b1 = b1.reshape(1, dim_h1)
    b2 = b2.reshape(1, dim_h2)
    b3 = b3.reshape(1, 2 * dim_z)

    if weights_dtype is not None:
        # bf16 weights trim the one-time ~272 KiB weight fetch and hit the
        # native MXU dtype (x/activations are also cast to this dtype inside
        # the kernel, so BOTH GEMM operands are reduced precision).  The big
        # HBM win comes from the producer handing x in bf16, not from this.
        w1 = w1.astype(weights_dtype)
        w2 = w2.astype(weights_dtype)
        w3 = w3.astype(weights_dtype)
    # Biases stay f32 and are added to the f32 accumulator.

    bt = _pick_batch_tile(B, dim_x, x2d.dtype.itemsize) if batch_tile is None \
        else batch_tile
    assert bt == B or bt % 8 == 0, \
        "batch_tile must be a multiple of 8 (sublanes) unless it equals B"
    bt = min(bt, B)
    grid = (pl.cdiv(B, bt),)   # ragged last tile is masked by Pallas
    # NOTE(v7x): an even grid count keeps both TensorCores busy under
    # dimension_semantics=("parallel",); with the 1024-row cap any B >= 2048
    # that is a multiple of 1024 already yields an even grid.

    out_dtype = x.dtype if out_dtype is None else out_dtype
    out_shape = jax.ShapeDtypeStruct((B, 2 * dim_z), out_dtype)

    # Raise the scoped-VMEM limit only if a caller-supplied tile needs it.
    est = _vmem_estimate(bt, dim_x, dim_h1, dim_h2, dim_z,
                         x2d.dtype.itemsize, w1.dtype.itemsize,
                         jnp.dtype(out_dtype).itemsize)
    vmem_limit = None
    if est > (14 << 20):
        vmem_limit = int(min(max(2 * est, 32 << 20), 64 << 20))

    # Weights / biases: constant index_map -> fetched once, reused every step.
    rep = lambda i: (0, 0)

    z = pl.pallas_call(
        encoder_mlp_kernel,
        out_shape=out_shape,
        grid_spec=pltpu.PrefetchScalarGridSpec(
            num_scalar_prefetch=0,
            grid=grid,
            in_specs=[
                pl.BlockSpec((bt, dim_x), lambda i: (i, 0)),      # x tile
                pl.BlockSpec((dim_x, dim_h1), rep),               # W1
                pl.BlockSpec((1, dim_h1), rep),                   # b1
                pl.BlockSpec((dim_h1, dim_h2), rep),              # W2
                pl.BlockSpec((1, dim_h2), rep),                   # b2
                pl.BlockSpec((dim_h2, 2 * dim_z), rep),           # W3
                pl.BlockSpec((1, 2 * dim_z), rep),                # b3
            ],
            out_specs=pl.BlockSpec((bt, 2 * dim_z), lambda i: (i, 0)),
        ),
        compiler_params=pltpu.CompilerParams(
            dimension_semantics=("parallel",),
            vmem_limit_bytes=vmem_limit),
    )(x2d, w1, b1, w2, b2, w3, b3)

    return z[:, :dim_z], z[:, dim_z:]


def init_params(key, dim_x, dim_h1, dim_h2, dim_z, dtype=jnp.float32):
    """Deterministic init mimicking torch.nn.Linear (U[-1/sqrt(fan_in), ...])."""
    def linear(k, fan_in, fan_out):
        kw, kb = jax.random.split(k)
        bound = 1.0 / jnp.sqrt(fan_in)
        w = jax.random.uniform(kw, (fan_in, fan_out), dtype, -bound, bound)
        b = jax.random.uniform(kb, (fan_out,), dtype, -bound, bound)  # torch-style (out,)
        return w, b

    k1, k2, k3 = jax.random.split(key, 3)
    w1, b1 = linear(k1, dim_x, dim_h1)
    w2, b2 = linear(k2, dim_h1, dim_h2)
    w3, b3 = linear(k3, dim_h2, 2 * dim_z)
    return {"w1": w1, "b1": b1, "w2": w2, "b2": b2, "w3": w3, "b3": b3}


def reference_forward(x, p):
    """Pure-JAX reference matching the PyTorch Encoder_MLP."""
    B = x.shape[0]
    h = jnp.maximum(x.reshape(B, -1) @ p["w1"] + p["b1"], 0.0)
    h = jnp.maximum(h @ p["w2"] + p["b2"], 0.0)
    out = h @ p["w3"] + p["b3"]
    dim_z = out.shape[-1] // 2
    return out[:, :dim_z], _softplus(out[:, dim_z:])


if __name__ == "__main__":
    # Module hyper-params (small, consistent with the PyTorch __init__).
    CHANNELS, WIDTH, HEIGHT = 4, 16, 16
    DIM_Z, DIM_HIDDEN_1, DIM_HIDDEN_2 = 32, 64, 32
    DIM_X = CHANNELS * WIDTH * HEIGHT            # 1024
    BATCH = 16

    key = jax.random.PRNGKey(0)
    k_param, k_x = jax.random.split(key)
    params = init_params(k_param, DIM_X, DIM_HIDDEN_1, DIM_HIDDEN_2, DIM_Z)
    x = jax.random.normal(k_x, (BATCH, CHANNELS, HEIGHT, WIDTH), jnp.float32)

    # f32 path, default tiling: small batch -> single grid step (no pipeline
    # overhead on single-TC chips).
    z_mu, z_std = encoder_mlp(x, params)
    jax.block_until_ready((z_mu, z_std))

    ref_mu, ref_std = reference_forward(x, params)
    assert z_mu.shape == (BATCH, DIM_Z) and z_std.shape == (BATCH, DIM_Z)
    assert jnp.allclose(z_mu, ref_mu, atol=1e-5, rtol=1e-5)
    assert jnp.allclose(z_std, ref_std, atol=1e-5, rtol=1e-5)
    assert bool(jnp.all(z_std >= 0.0))

    # Multi-step grid path (weight reuse + pipelining): B=64, 32-row tiles.
    x_big = jax.random.normal(jax.random.PRNGKey(1),
                              (64, CHANNELS, HEIGHT, WIDTH), jnp.float32)
    zb_mu, zb_std = encoder_mlp(x_big, params, batch_tile=32)
    jax.block_until_ready((zb_mu, zb_std))
    rb_mu, rb_std = reference_forward(x_big, params)
    assert jnp.allclose(zb_mu, rb_mu, atol=1e-5, rtol=1e-5)
    assert jnp.allclose(zb_std, rb_std, atol=1e-5, rtol=1e-5)

    # bf16 x + bf16 weights: halves the dominant x HBM stream, native MXU
    # dtype on v6e/v7x; accumulation stays f32.
    x_bf16 = x.astype(jnp.bfloat16)
    z_mu16, z_std16 = encoder_mlp(x_bf16, params,
                                  weights_dtype=jnp.bfloat16,
                                  out_dtype=jnp.float32)
    jax.block_until_ready((z_mu16, z_std16))
    assert jnp.allclose(z_mu16, ref_mu, atol=5e-2, rtol=5e-2)
    assert jnp.allclose(z_std16, ref_std, atol=5e-2, rtol=5e-2)
    assert bool(jnp.all(z_std16 >= 0.0))

    print("KERNEL_OK")
</pallas_src>

<mosaic_0001>
module attributes {stable_mosaic.version = 11 : i64} {
  func.func @encoder_mlp_kernel(%arg0: i32, %arg1: memref<16x1024xf32, #tpu.memory_space<vmem>>, %arg2: memref<1024x64xf32, #tpu.memory_space<vmem>>, %arg3: memref<1x64xf32, #tpu.memory_space<vmem>>, %arg4: memref<64x32xf32, #tpu.memory_space<vmem>>, %arg5: memref<1x32xf32, #tpu.memory_space<vmem>>, %arg6: memref<32x64xf32, #tpu.memory_space<vmem>>, %arg7: memref<1x64xf32, #tpu.memory_space<vmem>>, %arg8: memref<16x64xf32, #tpu.memory_space<vmem>>) attributes {dimension_semantics = [#tpu.dimension_semantics<parallel>], iteration_bounds = array<i64: 1>, scalar_prefetch = 0 : i64, scratch_operands = 0 : i64, tpu.core_type = #tpu.core_type<tc>, window_params = [{transform_indices = @transform_0, window_bounds = array<i64: 16, 1024>}, {pipeline_mode = #tpu.pipeline_mode<synchronous>, transform_indices = @transform_1, window_bounds = array<i64: 1024, 64>}, {pipeline_mode = #tpu.pipeline_mode<synchronous>, transform_indices = @transform_2, window_bounds = array<i64: 1, 64>}, {pipeline_mode = #tpu.pipeline_mode<synchronous>, transform_indices = @transform_3, window_bounds = array<i64: 64, 32>}, {pipeline_mode = #tpu.pipeline_mode<synchronous>, transform_indices = @transform_4, window_bounds = array<i64: 1, 32>}, {pipeline_mode = #tpu.pipeline_mode<synchronous>, transform_indices = @transform_5, window_bounds = array<i64: 32, 64>}, {pipeline_mode = #tpu.pipeline_mode<synchronous>, transform_indices = @transform_6, window_bounds = array<i64: 1, 64>}, {transform_indices = @transform_7, window_bounds = array<i64: 16, 64>}]} {
    %c0 = arith.constant 0 : index
    %c0_0 = arith.constant 0 : index
    %0 = vector.load %arg1[%c0, %c0_0] : memref<16x1024xf32, #tpu.memory_space<vmem>>, vector<16x1024xf32>
    %c0_1 = arith.constant 0 : index
    %c0_2 = arith.constant 0 : index
    %1 = vector.load %arg2[%c0_1, %c0_2] : memref<1024x64xf32, #tpu.memory_space<vmem>>, vector<1024x64xf32>
    %cst = arith.constant dense<0.000000e+00> : vector<16x64xf32>
    %2 = tpu.matmul %0, %1, %cst {dimension_numbers = #tpu.dot_dimension_numbers<[1], [0], [0], [1], [0, 0, 1, 1], [], []>} : vector<16x1024xf32>, vector<1024x64xf32>, vector<16x64xf32> -> vector<16x64xf32>
    %c0_3 = arith.constant 0 : index
    %c0_4 = arith.constant 0 : index
    %3 = vector.load %arg3[%c0_3, %c0_4] : memref<1x64xf32, #tpu.memory_space<vmem>>, vector<1x64xf32>
    %4 = vector.broadcast %3 : vector<1x64xf32> to vector<16x64xf32>
    %5 = arith.addf %2, %4 : vector<16x64xf32>
    %cst_5 = arith.constant 0.000000e+00 : f32
    %6 = vector.broadcast %cst_5 : f32 to vector<16x64xf32>
    %7 = arith.maximumf %5, %6 : vector<16x64xf32>
    %c0_6 = arith.constant 0 : index
    %c0_7 = arith.constant 0 : index
    %8 = vector.load %arg4[%c0_6, %c0_7] : memref<64x32xf32, #tpu.memory_space<vmem>>, vector<64x32xf32>
    %cst_8 = arith.constant dense<0.000000e+00> : vector<16x32xf32>
    %9 = tpu.matmul %7, %8, %cst_8 {dimension_numbers = #tpu.dot_dimension_numbers<[1], [0], [0], [1], [0, 0, 1, 1], [], []>} : vector<16x64xf32>, vector<64x32xf32>, vector<16x32xf32> -> vector<16x32xf32>
    %c0_9 = arith.constant 0 : index
    %c0_10 = arith.constant 0 : index
    %10 = vector.load %arg5[%c0_9, %c0_10] : memref<1x32xf32, #tpu.memory_space<vmem>>, vector<1x32xf32>
    %11 = vector.broadcast %10 : vector<1x32xf32> to vector<16x32xf32>
    %12 = arith.addf %9, %11 : vector<16x32xf32>
    %cst_11 = arith.constant 0.000000e+00 : f32
    %13 = vector.broadcast %cst_11 : f32 to vector<16x32xf32>
    %14 = arith.maximumf %12, %13 : vector<16x32xf32>
    %c0_12 = arith.constant 0 : index
    %c0_13 = arith.constant 0 : index
    %15 = vector.load %arg6[%c0_12, %c0_13] : memref<32x64xf32, #tpu.memory_space<vmem>>, vector<32x64xf32>
    %cst_14 = arith.constant dense<0.000000e+00> : vector<16x64xf32>
    %16 = tpu.matmul %14, %15, %cst_14 {dimension_numbers = #tpu.dot_dimension_numbers<[1], [0], [0], [1], [0, 0, 1, 1], [], []>} : vector<16x32xf32>, vector<32x64xf32>, vector<16x64xf32> -> vector<16x64xf32>
    %c0_15 = arith.constant 0 : index
    %c0_16 = arith.constant 0 : index
    %17 = vector.load %arg7[%c0_15, %c0_16] : memref<1x64xf32, #tpu.memory_space<vmem>>, vector<1x64xf32>
    %18 = vector.broadcast %17 : vector<1x64xf32> to vector<16x64xf32>
    %19 = arith.addf %16, %18 : vector<16x64xf32>
    %20 = tpu.iota {dimensions = array<i32: 1>} : vector<16x64xi32>
    %c32_i32 = arith.constant 32 : i32
    %21 = vector.broadcast %c32_i32 : i32 to vector<16x64xi32>
    %22 = arith.cmpi sge, %20, %21 : vector<16x64xi32>
    %cst_17 = arith.constant 2.000000e+01 : f32
    %23 = vector.broadcast %cst_17 : f32 to vector<16x64xf32>
    %24 = arith.cmpf ogt, %19, %23 : vector<16x64xf32>
    %cst_18 = arith.constant 2.000000e+01 : f32
    %25 = vector.broadcast %cst_18 : f32 to vector<16x64xf32>
    %26 = arith.minimumf %19, %25 : vector<16x64xf32>
    %27 = math.exp %26 : vector<16x64xf32>
    %28 = math.log1p %27 : vector<16x64xf32>
    %29 = arith.select %24, %19, %28 : vector<16x64xi1>, vector<16x64xf32>
    %30 = arith.select %22, %29, %19 : vector<16x64xi1>, vector<16x64xf32>
    %c0_19 = arith.constant 0 : index
    %c0_20 = arith.constant 0 : index
    %31 = vector.load %arg8[%c0_19, %c0_20] : memref<16x64xf32, #tpu.memory_space<vmem>>, vector<16x64xf32>
    tpu.vector_store %arg8[%c0_19, %c0_20], %30 {strides = array<i32>} : memref<16x64xf32, #tpu.memory_space<vmem>>, vector<16x64xf32>,
    return
  }
  func.func @transform_0(%arg0: i32) -> (i32, i32) {
    %c0_i32 = arith.constant 0 : i32
    %c0_i32_0 = arith.constant 0 : i32
    return %arg0, %c0_i32 : i32, i32
  }
  func.func @transform_1(%arg0: i32) -> (i32, i32) {
    %c0_i32 = arith.constant 0 : i32
    %c0_i32_0 = arith.constant 0 : i32
    %c0_i32_1 = arith.constant 0 : i32
    return %c0_i32, %c0_i32_0 : i32, i32
  }
  func.func @transform_2(%arg0: i32) -> (i32, i32) {
    %c0_i32 = arith.constant 0 : i32
    %c0_i32_0 = arith.constant 0 : i32
    %c0_i32_1 = arith.constant 0 : i32
    return %c0_i32, %c0_i32_0 : i32, i32
  }
  func.func @transform_3(%arg0: i32) -> (i32, i32) {
    %c0_i32 = arith.constant 0 : i32
    %c0_i32_0 = arith.constant 0 : i32
    %c0_i32_1 = arith.constant 0 : i32
    return %c0_i32, %c0_i32_0 : i32, i32
  }
  func.func @transform_4(%arg0: i32) -> (i32, i32) {
    %c0_i32 = arith.constant 0 : i32
    %c0_i32_0 = arith.constant 0 : i32
    %c0_i32_1 = arith.constant 0 : i32
    return %c0_i32, %c0_i32_0 : i32, i32
  }
  func.func @transform_5(%arg0: i32) -> (i32, i32) {
    %c0_i32 = arith.constant 0 : i32
    %c0_i32_0 = arith.constant 0 : i32
    %c0_i32_1 = arith.constant 0 : i32
    return %c0_i32, %c0_i32_0 : i32, i32
  }
  func.func @transform_6(%arg0: i32) -> (i32, i32) {
    %c0_i32 = arith.constant 0 : i32
    %c0_i32_0 = arith.constant 0 : i32
    %c0_i32_1 = arith.constant 0 : i32
    return %c0_i32, %c0_i32_0 : i32, i32
  }
  func.func @transform_7(%arg0: i32) -> (i32, i32) {
    %c0_i32 = arith.constant 0 : i32
    %c0_i32_0 = arith.constant 0 : i32
    return %arg0, %c0_i32 : i32, i32
  }
}

</mosaic_0001>

<llo_original>
// kernel: tpu_custom_call.1
$region0: #{tpu_custom_call.1}
  #allocation0 [shape = 'u32[]', space=smem, size = 0x4, offset = 0x4, fixed_abs, tag = 'smem constant byte address 0x4 - core index']
  #allocation1 [shape = 'u32[72,128]{1,0:T(1,128)}', space=vmem, size = 0x9000, scoped, tag = 'internal scratch']
  %s0 = inlined_call_operand.vmem [shape: f32[16,1024], index: 0, kind: input, shape index: {}]
  %s1 = inlined_call_operand.vmem [shape: f32[1024,64], index: 1, kind: input, shape index: {}]
  %s2 = inlined_call_operand.vmem [shape: f32[1,64], index: 2, kind: input, shape index: {}]
  %s3 = inlined_call_operand.vmem [shape: f32[64,32], index: 3, kind: input, shape index: {}]
  %s4 = inlined_call_operand.vmem [shape: f32[1,32], index: 4, kind: input, shape index: {}]
  %s5 = inlined_call_operand.vmem [shape: f32[32,64], index: 5, kind: input, shape index: {}]
  %s6 = inlined_call_operand.vmem [shape: f32[1,64], index: 6, kind: input, shape index: {}]
  %s7 = inlined_call_operand.hbm [shape: f32[16,64], index: 7, kind: output, shape index: {}]
  %s8 = sld [smem:[#allocation0]]
  $region38: #{tpu_custom_call.1} parent=0
    _
  %s10 = ssub.s32 1, %s8
  %s11 = scalar_select 0, %s10, %s8
  $region1: #{tpu_custom_call.1} parent=0
    #allocation2 [shape = 'u8[8192]{0}', space=vmem, size = 0x2000, scoped, tag = 'output window, operand 0, single buffered']
    #allocation3 [shape = 's32[1]{0}', space=sflag, size = 0x4, scoped, tag = 'scoped memory for tpu_custom_call.1']
    %12 = vsyncpa [#allocation3], 0
    // Predicated region
    $region2: #{tpu_custom_call.1} parent=1 // pred_check
      _
    $region3: #{tpu_custom_call.1} parent=1 // pred_check_branch
      %14 = sbr.rel (0) target = $region5
    $region4: #{tpu_custom_call.1} parent=1 // pred_region
      _
    $region5: #{tpu_custom_call.1} parent=1 // pred_fallthru
      _
    // Predicated region
    $region6: #{tpu_custom_call.1} parent=1 // pred_check
      _
    $region7: #{tpu_custom_call.1} parent=1 // pred_check_branch
      %16 = sbr.rel (0) target = $region9
    $region8: #{tpu_custom_call.1} parent=1 // pred_region
      _
    $region9: #{tpu_custom_call.1} parent=1 // pred_fallthru
      _
    // Predicated region
    $region10: #{tpu_custom_call.1} parent=1 // pred_check
      _
    $region11: #{tpu_custom_call.1} parent=1 // pred_check_branch
      %18 = sbr.rel (0) target = $region13
    $region12: #{tpu_custom_call.1} parent=1 // pred_region
      _
    $region13: #{tpu_custom_call.1} parent=1 // pred_fallthru
      _
    // Predicated region
    $region14: #{tpu_custom_call.1} parent=1 // pred_check
      _
    $region15: #{tpu_custom_call.1} parent=1 // pred_check_branch
      %20 = sbr.rel (0) target = $region17
    $region16: #{tpu_custom_call.1} parent=1 // pred_region
      _
    $region17: #{tpu_custom_call.1} parent=1 // pred_fallthru
      _
    // Predicated region
    $region18: #{tpu_custom_call.1} parent=1 // pred_check
      _
    $region19: #{tpu_custom_call.1} parent=1 // pred_check_branch
      %22 = sbr.rel (0) target = $region21
    $region20: #{tpu_custom_call.1} parent=1 // pred_region
      _
    $region21: #{tpu_custom_call.1} parent=1 // pred_fallthru
      _
    // Predicated region
    $region22: #{tpu_custom_call.1} parent=1 // pred_check
      _
    $region23: #{tpu_custom_call.1} parent=1 // pred_check_branch
      %24 = sbr.rel (0) target = $region25
    $region24: #{tpu_custom_call.1} parent=1 // pred_region
      _
    $region25: #{tpu_custom_call.1} parent=1 // pred_fallthru
      _
    // Predicated region
    $region26: #{tpu_custom_call.1} parent=1 // pred_check
      _
    $region27: #{tpu_custom_call.1} parent=1 // pred_check_branch
      %26 = sbr.rel (0) target = $region29
    $region28: #{tpu_custom_call.1} parent=1 // pred_region
      _
    $region29: #{tpu_custom_call.1} parent=1 // pred_fallthru
      _
    %v27 = vld [vmem:[%s0] sm:$0xff]
    %v28 = vld [vmem:[%s0 + $0x8] sm:$0xff]
    %v29 = vld [vmem:[%s0 + $0x10] sm:$0xff]
    %v30 = vld [vmem:[%s0 + $0x18] sm:$0xff]
    %v31 = vld [vmem:[%s0 + $0x20] sm:$0xff]
    %v32 = vld [vmem:[%s0 + $0x28] sm:$0xff]
    %v33 = vld [vmem:[%s0 + $0x30] sm:$0xff]
    %v34 = vld [vmem:[%s0 + $0x38] sm:$0xff]
    %v35 = vld [vmem:[%s0 + $0x40] sm:$0xff]
    %v36 = vld [vmem:[%s0 + $0x48] sm:$0xff]
    %v37 = vld [vmem:[%s0 + $0x50] sm:$0xff]
    %v38 = vld [vmem:[%s0 + $0x58] sm:$0xff]
    %v39 = vld [vmem:[%s0 + $0x60] sm:$0xff]
    %v40 = vld [vmem:[%s0 + $0x68] sm:$0xff]
    %v41 = vld [vmem:[%s0 + $0x70] sm:$0xff]
    %v42 = vld [vmem:[%s0 + $0x78] sm:$0xff]
    %v43 = vld [vmem:[%s1] sm:$0xff]
    %v44 = vld [vmem:[%s1 + $0x8] sm:$0xff]
    %v45 = vld [vmem:[%s1 + $0x10] sm:$0xff]
    %v46 = vld [vmem:[%s1 + $0x18] sm:$0xff]
    %v47 = vld [vmem:[%s1 + $0x20] sm:$0xff]
    %v48 = vld [vmem:[%s1 + $0x28] sm:$0xff]
    %v49 = vld [vmem:[%s1 + $0x30] sm:$0xff]
    %v50 = vld [vmem:[%s1 + $0x38] sm:$0xff]
    %v51 = vld [vmem:[%s1 + $0x40] sm:$0xff]
    %v52 = vld [vmem:[%s1 + $0x48] sm:$0xff]
    %v53 = vld [vmem:[%s1 + $0x50] sm:$0xff]
    %v54 = vld [vmem:[%s1 + $0x58] sm:$0xff]
    %v55 = vld [vmem:[%s1 + $0x60] sm:$0xff]
    %v56 = vld [vmem:[%s1 + $0x68] sm:$0xff]
    %v57 = vld [vmem:[%s1 + $0x70] sm:$0xff]
    %v58 = vld [vmem:[%s1 + $0x78] sm:$0xff]
    %v59 = vld [vmem:[%s1 + $0x80] sm:$0xff]
    %v60 = vld [vmem:[%s1 + $0x88] sm:$0xff]
    %v61 = vld [vmem:[%s1 + $0x90] sm:$0xff]
    %v62 = vld [vmem:[%s1 + $0x98] sm:$0xff]
    %v63 = vld [vmem:[%s1 + $0xa0] sm:$0xff]
    %v64 = vld [vmem:[%s1 + $0xa8] sm:$0xff]
    %v65 = vld [vmem:[%s1 + $0xb0] sm:$0xff]
    %v66 = vld [vmem:[%s1 + $0xb8] sm:$0xff]
    %v67 = vld [vmem:[%s1 + $0xc0] sm:$0xff]
    %v68 = vld [vmem:[%s1 + $0xc8] sm:$0xff]
    %v69 = vld [vmem:[%s1 + $0xd0] sm:$0xff]
    %v70 = vld [vmem:[%s1 + $0xd8] sm:$0xff]
    %v71 = vld [vmem:[%s1 + $0xe0] sm:$0xff]
    %v72 = vld [vmem:[%s1 + $0xe8] sm:$0xff]
    %v73 = vld [vmem:[%s1 + $0xf0] sm:$0xff]
    %v74 = vld [vmem:[%s1 + $0xf8] sm:$0xff]
    %v75 = vld [vmem:[%s1 + $0x100] sm:$0xff]
    %v76 = vld [vmem:[%s1 + $0x108] sm:$0xff]
    %v77 = vld [vmem:[%s1 + $0x110] sm:$0xff]
    %v78 = vld [vmem:[%s1 + $0x118] sm:$0xff]
    %v79 = vld [vmem:[%s1 + $0x120] sm:$0xff]
    %v80 = vld [vmem:[%s1 + $0x128] sm:$0xff]
    %v81 = vld [vmem:[%s1 + $0x130] sm:$0xff]
    %v82 = vld [vmem:[%s1 + $0x138] sm:$0xff]
    %v83 = vld [vmem:[%s1 + $0x140] sm:$0xff]
    %v84 = vld [vmem:[%s1 + $0x148] sm:$0xff]
    %v85 = vld [vmem:[%s1 + $0x150] sm:$0xff]
    %v86 = vld [vmem:[%s1 + $0x158] sm:$0xff]
    %v87 = vld [vmem:[%s1 + $0x160] sm:$0xff]
    %v88 = vld [vmem:[%s1 + $0x168] sm:$0xff]
    %v89 = vld [vmem:[%s1 + $0x170] sm:$0xff]
    %v90 = vld [vmem:[%s1 + $0x178] sm:$0xff]
    %v91 = vld [vmem:[%s1 + $0x180] sm:$0xff]
    %v92 = vld [vmem:[%s1 + $0x188] sm:$0xff]
    %v93 = vld [vmem:[%s1 + $0x190] sm:$0xff]
    %v94 = vld [vmem:[%s1 + $0x198] sm:$0xff]
    %v95 = vld [vmem:[%s1 + $0x1a0] sm:$0xff]
    %v96 = vld [vmem:[%s1 + $0x1a8] sm:$0xff]
    %v97 = vld [vmem:[%s1 + $0x1b0] sm:$0xff]
    %v98 = vld [vmem:[%s1 + $0x1b8] sm:$0xff]
    %v99 = vld [vmem:[%s1 + $0x1c0] sm:$0xff]
    %v100 = vld [vmem:[%s1 + $0x1c8] sm:$0xff]
    %v101 = vld [vmem:[%s1 + $0x1d0] sm:$0xff]
    %v102 = vld [vmem:[%s1 + $0x1d8] sm:$0xff]
    %v103 = vld [vmem:[%s1 + $0x1e0] sm:$0xff]
    %v104 = vld [vmem:[%s1 + $0x1e8] sm:$0xff]
    %v105 = vld [vmem:[%s1 + $0x1f0] sm:$0xff]
    %v106 = vld [vmem:[%s1 + $0x1f8] sm:$0xff]
    %v107 = vld [vmem:[%s1 + $0x200] sm:$0xff]
    %v108 = vld [vmem:[%s1 + $0x208] sm:$0xff]
    %v109 = vld [vmem:[%s1 + $0x210] sm:$0xff]
    %v110 = vld [vmem:[%s1 + $0x218] sm:$0xff]
    %v111 = vld [vmem:[%s1 + $0x220] sm:$0xff]
    %v112 = vld [vmem:[%s1 + $0x228] sm:$0xff]
    %v113 = vld [vmem:[%s1 + $0x230] sm:$0xff]
    %v114 = vld [vmem:[%s1 + $0x238] sm:$0xff]
    %v115 = vld [vmem:[%s1 + $0x240] sm:$0xff]
    %v116 = vld [vmem:[%s1 + $0x248] sm:$0xff]
    %v117 = vld [vmem:[%s1 + $0x250] sm:$0xff]
    %v118 = vld [vmem:[%s1 + $0x258] sm:$0xff]
    %v119 = vld [vmem:[%s1 + $0x260] sm:$0xff]
    %v120 = vld [vmem:[%s1 + $0x268] sm:$0xff]
    %v121 = vld [vmem:[%s1 + $0x270] sm:$0xff]
    %v122 = vld [vmem:[%s1 + $0x278] sm:$0xff]
    %v123 = vld [vmem:[%s1 + $0x280] sm:$0xff]
    %v124 = vld [vmem:[%s1 + $0x288] sm:$0xff]
    %v125 = vld [vmem:[%s1 + $0x290] sm:$0xff]
    %v126 = vld [vmem:[%s1 + $0x298] sm:$0xff]
    %v127 = vld [vmem:[%s1 + $0x2a0] sm:$0xff]
    %v128 = vld [vmem:[%s1 + $0x2a8] sm:$0xff]
    %v129 = vld [vmem:[%s1 + $0x2b0] sm:$0xff]
    %v130 = vld [vmem:[%s1 + $0x2b8] sm:$0xff]
    %v131 = vld [vmem:[%s1 + $0x2c0] sm:$0xff]
    %v132 = vld [vmem:[%s1 + $0x2c8] sm:$0xff]
    %v133 = vld [vmem:[%s1 + $0x2d0] sm:$0xff]
    %v134 = vld [vmem:[%s1 + $0x2d8] sm:$0xff]
    %v135 = vld [vmem:[%s1 + $0x2e0] sm:$0xff]
    %v136 = vld [vmem:[%s1 + $0x2e8] sm:$0xff]
    %v137 = vld [vmem:[%s1 + $0x2f0] sm:$0xff]
    %v138 = vld [vmem:[%s1 + $0x2f8] sm:$0xff]
    %v139 = vld [vmem:[%s1 + $0x300] sm:$0xff]
    %v140 = vld [vmem:[%s1 + $0x308] sm:$0xff]
    %v141 = vld [vmem:[%s1 + $0x310] sm:$0xff]
    %v142 = vld [vmem:[%s1 + $0x318] sm:$0xff]
    %v143 = vld [vmem:[%s1 + $0x320] sm:$0xff]
    %v144 = vld [vmem:[%s1 + $0x328] sm:$0xff]
    %v145 = vld [vmem:[%s1 + $0x330] sm:$0xff]
    %v146 = vld [vmem:[%s1 + $0x338] sm:$0xff]
    %v147 = vld [vmem:[%s1 + $0x340] sm:$0xff]
    %v148 = vld [vmem:[%s1 + $0x348] sm:$0xff]
    %v149 = vld [vmem:[%s1 + $0x350] sm:$0xff]
    %v150 = vld [vmem:[%s1 + $0x358] sm:$0xff]
    %v151 = vld [vmem:[%s1 + $0x360] sm:$0xff]
    %v152 = vld [vmem:[%s1 + $0x368] sm:$0xff]
    %v153 = vld [vmem:[%s1 + $0x370] sm:$0xff]
    %v154 = vld [vmem:[%s1 + $0x378] sm:$0xff]
    %v155 = vld [vmem:[%s1 + $0x380] sm:$0xff]
    %v156 = vld [vmem:[%s1 + $0x388] sm:$0xff]
    %v157 = vld [vmem:[%s1 + $0x390] sm:$0xff]
    %v158 = vld [vmem:[%s1 + $0x398] sm:$0xff]
    %v159 = vld [vmem:[%s1 + $0x3a0] sm:$0xff]
    %v160 = vld [vmem:[%s1 + $0x3a8] sm:$0xff]
    %v161 = vld [vmem:[%s1 + $0x3b0] sm:$0xff]
    %v162 = vld [vmem:[%s1 + $0x3b8] sm:$0xff]
    %v163 = vld [vmem:[%s1 + $0x3c0] sm:$0xff]
    %v164 = vld [vmem:[%s1 + $0x3c8] sm:$0xff]
    %v165 = vld [vmem:[%s1 + $0x3d0] sm:$0xff]
    %v166 = vld [vmem:[%s1 + $0x3d8] sm:$0xff]
    %v167 = vld [vmem:[%s1 + $0x3e0] sm:$0xff]
    %v168 = vld [vmem:[%s1 + $0x3e8] sm:$0xff]
    %v169 = vld [vmem:[%s1 + $0x3f0] sm:$0xff]
    %v170 = vld [vmem:[%s1 + $0x3f8] sm:$0xff]
    %v171 = vld [vmem:[%s2] sm:$0x1]
    %v173 = vperm.slane %v171, 0
    %175 = vmatpush.msra.mxu0 %v58
    %176 = vmatpush.msra.mxu0 %v57
    %177 = vmatpush.msra.mxu0 %v56
    %178 = vmatpush.msra.mxu0 %v55
    %179 = vmatpush.msra.mxu0 %v54
    %180 = vmatpush.msra.mxu0 %v53
    %181 = vmatpush.msra.mxu0 %v52
    %182 = vmatpush.msra.mxu0 %v51
    %183 = vmatpush.msra.mxu0 %v50
    %184 = vmatpush.msra.mxu0 %v49
    %185 = vmatpush.msra.mxu0 %v48
    %186 = vmatpush.msra.mxu0 %v47
    %187 = vmatpush.msra.mxu0 %v46
    %188 = vmatpush.msra.mxu0 %v45
    %189 = vmatpush.msra.mxu0 %v44
    %190 = vmatpush.msra.mxu0 %v43
    %191 = vmatmul.f32.gmra.mxu0 %v27
    %v192 = vpop.f32.mrf.mxu0
    %v193 = vadd.f32 %v173, %v192
    %194 = vmatmul.f32.gmra.mxu0 %v35
    %v195 = vpop.f32.mrf.mxu0
    %v196 = vadd.f32 %v173, %v195
    %197 = vdwg.mxu0
    %198 = vmatpush.msra.mxu0 %v74
    %199 = vmatpush.msra.mxu0 %v73
    %200 = vmatpush.msra.mxu0 %v72
    %201 = vmatpush.msra.mxu0 %v71
    %202 = vmatpush.msra.mxu0 %v70
    %203 = vmatpush.msra.mxu0 %v69
    %204 = vmatpush.msra.mxu0 %v68
    %205 = vmatpush.msra.mxu0 %v67
    %206 = vmatpush.msra.mxu0 %v66
    %207 = vmatpush.msra.mxu0 %v65
    %208 = vmatpush.msra.mxu0 %v64
    %209 = vmatpush.msra.mxu0 %v63
    %210 = vmatpush.msra.mxu0 %v62
    %211 = vmatpush.msra.mxu0 %v61
    %212 = vmatpush.msra.mxu0 %v60
    %213 = vmatpush.msra.mxu0 %v59
    %214 = vmatmul.f32.gmra.mxu0 %v28
    %v215 = vpop.f32.mrf.mxu0
    %v216 = vadd.f32 %v193, %v215
    %217 = vmatmul.f32.gmra.mxu0 %v36
    %v218 = vpop.f32.mrf.mxu0
    %v219 = vadd.f32 %v196, %v218
    %220 = vdwg.mxu0
    %221 = vmatpush.msra.mxu0 %v90
    %222 = vmatpush.msra.mxu0 %v89
    %223 = vmatpush.msra.mxu0 %v88
    %224 = vmatpush.msra.mxu0 %v87
    %225 = vmatpush.msra.mxu0 %v86
    %226 = vmatpush.msra.mxu0 %v85
    %227 = vmatpush.msra.mxu0 %v84
    %228 = vmatpush.msra.mxu0 %v83
    %229 = vmatpush.msra.mxu0 %v82
    %230 = vmatpush.msra.mxu0 %v81
    %231 = vmatpush.msra.mxu0 %v80
    %232 = vmatpush.msra.mxu0 %v79
    %233 = vmatpush.msra.mxu0 %v78
    %234 = vmatpush.msra.mxu0 %v77
    %235 = vmatpush.msra.mxu0 %v76
    %236 = vmatpush.msra.mxu0 %v75
    %237 = vmatmul.f32.gmra.mxu0 %v29
    %v238 = vpop.f32.mrf.mxu0
    %v239 = vadd.f32 %v216, %v238
    %240 = vmatmul.f32.gmra.mxu0 %v37
    %v241 = vpop.f32.mrf.mxu0
    %v242 = vadd.f32 %v219, %v241
    %243 = vdwg.mxu0
    %244 = vmatpush.msra.mxu0 %v106
    %245 = vmatpush.msra.mxu0 %v105
    %246 = vmatpush.msra.mxu0 %v104
    %247 = vmatpush.msra.mxu0 %v103
    %248 = vmatpush.msra.mxu0 %v102
    %249 = vmatpush.msra.mxu0 %v101
    %250 = vmatpush.msra.mxu0 %v100
    %251 = vmatpush.msra.mxu0 %v99
    %252 = vmatpush.msra.mxu0 %v98
    %253 = vmatpush.msra.mxu0 %v97
    %254 = vmatpush.msra.mxu0 %v96
    %255 = vmatpush.msra.mxu0 %v95
    %256 = vmatpush.msra.mxu0 %v94
    %257 = vmatpush.msra.mxu0 %v93
    %258 = vmatpush.msra.mxu0 %v92
    %259 = vmatpush.msra.mxu0 %v91
    %260 = vmatmul.f32.gmra.mxu0 %v30
    %v261 = vpop.f32.mrf.mxu0
    %v262 = vadd.f32 %v239, %v261
    %263 = vmatmul.f32.gmra.mxu0 %v38
    %v264 = vpop.f32.mrf.mxu0
    %v265 = vadd.f32 %v242, %v264
    %266 = vdwg.mxu0
    %267 = vmatpush.msra.mxu0 %v122
    %268 = vmatpush.msra.mxu0 %v121
    %269 = vmatpush.msra.mxu0 %v120
    %270 = vmatpush.msra.mxu0 %v119
    %271 = vmatpush.msra.mxu0 %v118
    %272 = vmatpush.msra.mxu0 %v117
    %273 = vmatpush.msra.mxu0 %v116
    %274 = vmatpush.msra.mxu0 %v115
    %275 = vmatpush.msra.mxu0 %v114
    %276 = vmatpush.msra.mxu0 %v113
    %277 = vmatpush.msra.mxu0 %v112
    %278 = vmatpush.msra.mxu0 %v111
    %279 = vmatpush.msra.mxu0 %v110
    %280 = vmatpush.msra.mxu0 %v109
    %281 = vmatpush.msra.mxu0 %v108
    %282 = vmatpush.msra.mxu0 %v107
    %283 = vmatmul.f32.gmra.mxu0 %v31
    %v284 = vpop.f32.mrf.mxu0
    %v285 = vadd.f32 %v262, %v284
    %286 = vmatmul.f32.gmra.mxu0 %v39
    %v287 = vpop.f32.mrf.mxu0
    %v288 = vadd.f32 %v265, %v287
    %289 = vdwg.mxu0
    %290 = vmatpush.msra.mxu0 %v138
    %291 = vmatpush.msra.mxu0 %v137
    %292 = vmatpush.msra.mxu0 %v136
    %293 = vmatpush.msra.mxu0 %v135
    %294 = vmatpush.msra.mxu0 %v134
    %295 = vmatpush.msra.mxu0 %v133
    %296 = vmatpush.msra.mxu0 %v132
    %297 = vmatpush.msra.mxu0 %v131
    %298 = vmatpush.msra.mxu0 %v130
    %299 = vmatpush.msra.mxu0 %v129
    %300 = vmatpush.msra.mxu0 %v128
    %301 = vmatpush.msra.mxu0 %v127
    %302 = vmatpush.msra.mxu0 %v126
    %303 = vmatpush.msra.mxu0 %v125
    %304 = vmatpush.msra.mxu0 %v124
    %305 = vmatpush.msra.mxu0 %v123
    %306 = vmatmul.f32.gmra.mxu0 %v32
    %v307 = vpop.f32.mrf.mxu0
    %v308 = vadd.f32 %v285, %v307
    %309 = vmatmul.f32.gmra.mxu0 %v40
    %v310 = vpop.f32.mrf.mxu0
    %v311 = vadd.f32 %v288, %v310
    %312 = vdwg.mxu0
    %313 = vmatpush.msra.mxu0 %v154
    %314 = vmatpush.msra.mxu0 %v153
    %315 = vmatpush.msra.mxu0 %v152
    %316 = vmatpush.msra.mxu0 %v151
    %317 = vmatpush.msra.mxu0 %v150
    %318 = vmatpush.msra.mxu0 %v149
    %319 = vmatpush.msra.mxu0 %v148
    %320 = vmatpush.msra.mxu0 %v147
    %321 = vmatpush.msra.mxu0 %v146
    %322 = vmatpush.msra.mxu0 %v145
    %323 = vmatpush.msra.mxu0 %v144
    %324 = vmatpush.msra.mxu0 %v143
    %325 = vmatpush.msra.mxu0 %v142
    %326 = vmatpush.msra.mxu0 %v141
    %327 = vmatpush.msra.mxu0 %v140
    %328 = vmatpush.msra.mxu0 %v139
    %329 = vmatmul.f32.gmra.mxu0 %v33
    %v330 = vpop.f32.mrf.mxu0
    %v331 = vadd.f32 %v308, %v330
    %332 = vmatmul.f32.gmra.mxu0 %v41
    %v333 = vpop.f32.mrf.mxu0
    %v334 = vadd.f32 %v311, %v333
    %335 = vdwg.mxu0
    %336 = vmatpush.msra.mxu0 %v170
    %337 = vmatpush.msra.mxu0 %v169
    %338 = vmatpush.msra.mxu0 %v168
    %339 = vmatpush.msra.mxu0 %v167
    %340 = vmatpush.msra.mxu0 %v166
    %341 = vmatpush.msra.mxu0 %v165
    %342 = vmatpush.msra.mxu0 %v164
    %343 = vmatpush.msra.mxu0 %v163
    %344 = vmatpush.msra.mxu0 %v162
    %345 = vmatpush.msra.mxu0 %v161
    %346 = vmatpush.msra.mxu0 %v160
    %347 = vmatpush.msra.mxu0 %v159
    %348 = vmatpush.msra.mxu0 %v158
    %349 = vmatpush.msra.mxu0 %v157
    %350 = vmatpush.msra.mxu0 %v156
    %351 = vmatpush.msra.mxu0 %v155
    %352 = vmatmul.f32.gmra.mxu0 %v34
    %v353 = vpop.f32.mrf.mxu0
    %v354 = vadd.f32 %v331, %v353
    %355 = vmatmul.f32.gmra.mxu0 %v42
    %v356 = vpop.f32.mrf.mxu0
    %v357 = vadd.f32 %v334, %v356
    %358 = vdwg.mxu0
    %v359 = vmax.f32 %v354, 0.0
    %v360 = vmax.f32 %v357, 0.0
    %v361 = vld [vmem:[%s3] sm:$0xff]
    %v362 = vld [vmem:[%s3 + $0x8] sm:$0xff]
    %v363 = vld [vmem:[%s3 + $0x10] sm:$0xff]
    %v364 = vld [vmem:[%s3 + $0x18] sm:$0xff]
    %v365 = vld [vmem:[%s3 + $0x20] sm:$0xff]
    %v366 = vld [vmem:[%s3 + $0x28] sm:$0xff]
    %v367 = vld [vmem:[%s3 + $0x30] sm:$0xff]
    %v368 = vld [vmem:[%s3 + $0x38] sm:$0xff]
    %v369 = vld [vmem:[%s4] sm:$0x1]
    %v371 = vperm.slane %v369, 0
    %vm373 = vcmask 523264
    %v375 = vsel %vm373, %v359, 0
    %v378 = vsel %vm373, %v360, 0
    %380 = vmatpush.msra.mxu0 0.0
    %381 = vmatpush.msra.mxu0 0.0
    %382 = vmatpush.msra.mxu0 0.0
    %383 = vmatpush.msra.mxu0 0.0
    %384 = vmatpush.msra.mxu0 0.0
    %385 = vmatpush.msra.mxu0 0.0
    %386 = vmatpush.msra.mxu0 0.0
    %387 = vmatpush.msra.mxu0 0.0
    %388 = vmatpush.msra.mxu0 %v368
    %389 = vmatpush.msra.mxu0 %v367
    %390 = vmatpush.msra.mxu0 %v366
    %391 = vmatpush.msra.mxu0 %v365
    %392 = vmatpush.msra.mxu0 %v364
    %393 = vmatpush.msra.mxu0 %v363
    %394 = vmatpush.msra.mxu0 %v362
    %395 = vmatpush.msra.mxu0 %v361
    %396 = vmatmul.f32.gmra.mxu0 %v375
    %v397 = vpop.f32.mrf.mxu0
    %v398 = vadd.f32 %v371, %v397
    %399 = vmatmul.f32.gmra.mxu0 %v378
    %v400 = vpop.f32.mrf.mxu0
    %v401 = vadd.f32 %v371, %v400
    %402 = vdwg.mxu0
    %v403 = vmax.f32 %v398, 0.0
    %v404 = vmax.f32 %v401, 0.0
    %v405 = vld [vmem:[%s5] sm:$0xff]
    %v406 = vld [vmem:[%s5 + $0x8] sm:$0xff]
    %v407 = vld [vmem:[%s5 + $0x10] sm:$0xff]
    %v408 = vld [vmem:[%s5 + $0x18] sm:$0xff]
    %v409 = vld [vmem:[%s6] sm:$0x1]
    %v411 = vperm.slane %v409, 0
    %vm413 = vcmask 261120
    %v415 = vsel %vm413, %v403, 0
    %v418 = vsel %vm413, %v404, 0
    %420 = vmatpush.msra.mxu0 0.0
    %421 = vmatpush.msra.mxu0 0.0
    %422 = vmatpush.msra.mxu0 0.0
    %423 = vmatpush.msra.mxu0 0.0
    %424 = vmatpush.msra.mxu0 0.0
    %425 = vmatpush.msra.mxu0 0.0
    %426 = vmatpush.msra.mxu0 0.0
    %427 = vmatpush.msra.mxu0 0.0
    %428 = vmatpush.msra.mxu0 0.0
    %429 = vmatpush.msra.mxu0 0.0
    %430 = vmatpush.msra.mxu0 0.0
    %431 = vmatpush.msra.mxu0 0.0
    %432 = vmatpush.msra.mxu0 %v408
    %433 = vmatpush.msra.mxu0 %v407
    %434 = vmatpush.msra.mxu0 %v406
    %435 = vmatpush.msra.mxu0 %v405
    %436 = vmatmul.f32.gmra.mxu0 %v415
    %v437 = vpop.f32.mrf.mxu0
    %v438 = vadd.f32 %v411, %v437
    %439 = vmatmul.f32.gmra.mxu0 %v418
    %v440 = vpop.f32.mrf.mxu0
    %v441 = vadd.f32 %v411, %v440
    %442 = vdwg.mxu0
    %v443 = vlaneseq
    %v444 = vand.u32 %v443, 127
    %vm445 = vcmp.ge.s32.totalorder %v444, 32
    %vm446 = vcmp.gt.f32.partialorder %v438, 20.0
    %vm447 = vcmp.gt.f32.partialorder %v441, 20.0
    %v448 = vmin.f32 %v438, 20.0
    %v449 = vmin.f32 %v441, 20.0
    %v450 = vmul.f32 %v448, 1.442695
    %v451 = vpow.pop %v450
    %v452 = vmul.f32 %v449, 1.442695
    %v453 = vpow.pop %v452
    %v454 = vadd.f32 %v451, 1.0
    %v455 = vlog2.pop %v454
    %v456 = vmul.f32 %v455, 0.6931472
    %v457 = vmul.f32 -0.5, %v451
    %v458 = vadd.f32 %v457, 1.0
    %v459 = vmul.f32 %v458, %v451
    %v460 = vand.u32 2147483647, %v451
    %vm461 = vcmp.lt.f32.partialorder %v460, 0.0004427343
    %v462 = vsel %vm461, %v459, %v456
    %v463 = vadd.f32 %v453, 1.0
    %v464 = vlog2.pop %v463
    %v465 = vmul.f32 %v464, 0.6931472
    %v466 = vmul.f32 -0.5, %v453
    %v467 = vadd.f32 %v466, 1.0
    %v468 = vmul.f32 %v467, %v453
    %v469 = vand.u32 2147483647, %v453
    %vm470 = vcmp.lt.f32.partialorder %v469, 0.0004427343
    %v471 = vsel %vm470, %v468, %v465
    %v472 = vsel %vm446, %v438, %v462
    %v473 = vsel %vm447, %v441, %v471
    %v474 = vsel %vm445, %v472, %v438
    %v475 = vsel %vm445, %v473, %v441
    %476 = vst.msk [vmem:[#allocation2] sm:$0xff] %vm373, %v474
    %477 = vst.msk [vmem:[#allocation2 + $0x8] sm:$0xff] %vm373, %v475
    // Predicated region
    $region30: #{tpu_custom_call.1} parent=1 // pred_check
      _
    $region31: #{tpu_custom_call.1} parent=1 // pred_check_branch
      %479 = sbr.rel (0) target = $region33
    $region32: #{tpu_custom_call.1} parent=1 // pred_region
      %481 = vsyncadd [#allocation3], 0
      %s482 = sshll.u32 [#allocation2], 4
      %s483 = int_to_ptr.vmem [resolvable:$true] %s482
      %s484 = sshll.u32 %s7, 4
      %s485 = int_to_ptr.hbm [resolvable:$true] %s484
      %490 = dma.vmem_to_hbm [thread:$0]  %s483, 256, %s485, [#allocation3], 128, 128, 8
    $region33: #{tpu_custom_call.1} parent=1 // pred_fallthru
      _
    // Predicated region
    $region34: #{tpu_custom_call.1} parent=1 // pred_check
      _
    $region35: #{tpu_custom_call.1} parent=1 // pred_check_branch
      %492 = sbr.rel (0) target = $region37
    $region36: #{tpu_custom_call.1} parent=1 // pred_region
      %494 = dma.done [#allocation3], 256
    $region37: #{tpu_custom_call.1} parent=1 // pred_fallthru
      _
    %495 = vsyncpa [#allocation3], 1

</llo_original>
